<compile_context>
chip_gen: v5e
topology: v5e:2x2
jax: 0.10.0
libtpu: 0.0.40
codegen_flags: <defaults>
</compile_context>

<pallas_src>
import functools

import jax
import jax.numpy as jnp
from jax.experimental import pallas as pl
from jax.experimental.pallas import tpu as pltpu


def _hswish(v):
    # x * ReLU6(x + 3) / 6
    return v * (jnp.clip(v + 3.0, 0.0, 6.0) * (1.0 / 6.0))


def conv_bn_hswish_kernel(x_ref, g_ref, s_ref, b_ref, o_ref):
    """One matmul + BN epilogue + h_swish.

    x_ref: (tm, Kp)  bf16  row-window im2col'd input (K = dy-stacked (W+2)*C1,
                           zero-padded to Kp)
    g_ref: (Kp, N)   bf16  block-banded conv weights, dy-stacked along K
    s_ref: (1, N)    f32   BN scale, tiled over W
    b_ref: (1, N)    f32   BN bias (beta - mean*scale), tiled over W
    o_ref: (tm, N)   f32   lane-dense output rows (N = W*C2)
    """
    acc = jnp.dot(x_ref[...], g_ref[...], preferred_element_type=jnp.float32)
    y = acc * s_ref[...] + b_ref[...]
    o_ref[...] = _hswish(y)


def fold_params(raw, W):
    """Build the dy-stacked block-banded weight G (bf16) + f32 scale/bias rows."""
    w = raw["w"]                                   # (3, 3, C1, C2), HWIO
    C1, C2 = w.shape[2], w.shape[3]
    eps = 1e-5
    scale = raw["gamma"] / jnp.sqrt(raw["var"] + eps)      # (C2,)
    bias = raw["beta"] - raw["mean"] * scale               # (C2,)

    Wp = W + 2
    Krow = Wp * C1
    K = 3 * Krow
    Kp = pl.cdiv(K, 128) * 128                              # 216 -> 256

    # g[dy, (u+dx)*C1 + c1, u*C2 + c2] = w[dy, dx, c1, c2]   (scale NOT folded)
    eye = jnp.eye(W, dtype=jnp.float32)
    g = jnp.zeros((3, Krow, W * C2), jnp.float32)
    for dx in range(3):
        blk = w[:, dx]                                       # (3, C1, C2)
        piece = jnp.einsum("uv,kio->kuivo", eye, blk).reshape(3, W * C1, W * C2)
        g = g.at[:, dx * C1:dx * C1 + W * C1, :].add(piece)

    g = g.reshape(K, W * C2)
    g = jnp.pad(g, ((0, Kp - K), (0, 0)))                    # zero-pad K axis

    return {
        "g": g.astype(jnp.bfloat16),                         # (Kp, W*C2)
        "scale": jnp.tile(scale[None, :], (1, W)).astype(jnp.float32),  # (1, W*C2)
        "bias": jnp.tile(bias[None, :], (1, W)).astype(jnp.float32),    # (1, W*C2)
    }


def conv_bn_hswish_forward(x_nchw, g, scale_row, bias_row, *, tm=128):
    """NCHW in / NCHW out, matching the PyTorch module (stride=1 instance)."""
    B, C1, H, W = x_nchw.shape
    N = bias_row.shape[1]
    C2 = N // W
    Kp = g.shape[0]
    Krow = (W + 2) * C1
    K = 3 * Krow

    # NHWC, bf16 at the dot boundary, SAME padding; stack the dy row windows
    # along K so the kernel is a single matmul.
    x = jnp.transpose(x_nchw, (0, 2, 3, 1)).astype(jnp.bfloat16)
    xp = jnp.pad(x, ((0, 0), (1, 1), (1, 1), (0, 0)))        # (B, H+2, W+2, C1)
    xr = xp.reshape(B, H + 2, Krow)
    x_dy = jnp.concatenate([xr[:, dy:dy + H, :] for dy in range(3)], axis=-1)
    M = B * H
    x_dy = x_dy.reshape(M, K)

    tm_eff = min(tm, pl.cdiv(M, 8) * 8)                      # sublane-aligned
    Mp = pl.cdiv(M, tm_eff) * tm_eff
    x_dy = jnp.pad(x_dy, ((0, Mp - M), (0, Kp - K)))         # pad M tail + K

    out = pl.pallas_call(
        conv_bn_hswish_kernel,
        out_shape=jax.ShapeDtypeStruct((Mp, N), jnp.float32),
        grid=(Mp // tm_eff,),
        in_specs=[
            pl.BlockSpec((tm_eff, Kp), lambda i: (i, 0)),
            pl.BlockSpec((Kp, N), lambda i: (0, 0)),
            pl.BlockSpec((1, N), lambda i: (0, 0)),
            pl.BlockSpec((1, N), lambda i: (0, 0)),
        ],
        out_specs=pl.BlockSpec((tm_eff, N), lambda i: (i, 0)),
        compiler_params=pltpu.CompilerParams(
            dimension_semantics=("parallel",)),
    )(x_dy, g, scale_row, bias_row)

    y = out[:M].reshape(B, H, W, C2)
    return jnp.transpose(y, (0, 3, 1, 2))                    # -> NCHW


def make_params(c1, c2):
    """Deterministic synthetic conv weight + BN running stats."""
    key = jax.random.PRNGKey(0)
    i = jnp.arange(c2, dtype=jnp.float32)
    return {
        "w": 0.2 * jax.random.normal(key, (3, 3, c1, c2), jnp.float32),  # HWIO
        "gamma": 1.0 + 0.1 * jnp.sin(i),
        "beta": 0.05 * jnp.cos(i),
        "mean": 0.02 * i,
        "var": 1.0 + 0.1 * jnp.abs(jnp.sin(0.5 * i)),
    }


def reference(x_nchw, raw):
    """Pure-JAX f32 reference of the same forward pass (NCHW in / NCHW out)."""
    x = jnp.transpose(x_nchw, (0, 2, 3, 1)).astype(jnp.float32)
    B, H, W, _ = x.shape
    w = raw["w"]
    eps = 1e-5
    scale = raw["gamma"] / jnp.sqrt(raw["var"] + eps)
    bias = raw["beta"] - raw["mean"] * scale

    xp = jnp.pad(x, ((0, 0), (1, 1), (1, 1), (0, 0)))
    acc = jnp.zeros((B, H, W, w.shape[-1]), jnp.float32)
    for dy in range(3):
        for dx in range(3):
            acc = acc + jnp.einsum(
                "bhwc,cd->bhwd", xp[:, dy:dy + H, dx:dx + W, :], w[dy, dx],
                precision=jax.lax.Precision.HIGHEST)
    y = acc * scale + bias
    y = _hswish(y)
    return jnp.transpose(y, (0, 3, 1, 2))


if __name__ == "__main__":
    # conv_bn_hswish(c1=4, c2=32, stride=1) on a (2, 4, 16, 16) input.
    # TODO(synk): stride > 1 (e.g. the MobileNetV3 stem's stride-2 instance) is
    # not implemented in this kernel; this instance uses stride=1.
    B, C1, H, W = 2, 4, 16, 16
    C2 = 32

    raw = make_params(C1, C2)
    folded = fold_params(raw, W)
    x = jax.random.normal(jax.random.PRNGKey(0), (B, C1, H, W), jnp.float32)

    run = jax.jit(functools.partial(
        conv_bn_hswish_forward,
        g=folded["g"], scale_row=folded["scale"], bias_row=folded["bias"]))
    y = jax.block_until_ready(run(x))

    y_ref = jax.block_until_ready(reference(x, raw))
    assert y.shape == (B, C2, H, W)
    max_err = float(jnp.max(jnp.abs(y - y_ref)))
    # bf16 matmul operands with f32 accumulation; BN scale/bias applied in f32
    # so only the conv dot carries bf16 quantization error.
    assert jnp.allclose(y, y_ref, rtol=5e-2, atol=5e-2), max_err

    print("KERNEL_OK")
</pallas_src>

<mosaic_0001>
module attributes {stable_mosaic.version = 11 : i64} {
  func.func @conv_bn_hswish_kernel(%arg0: i32, %arg1: memref<32x256xbf16, #tpu.memory_space<vmem>>, %arg2: memref<256x512xbf16, #tpu.memory_space<vmem>>, %arg3: memref<1x512xf32, #tpu.memory_space<vmem>>, %arg4: memref<1x512xf32, #tpu.memory_space<vmem>>, %arg5: memref<32x512xf32, #tpu.memory_space<vmem>>) attributes {dimension_semantics = [#tpu.dimension_semantics<parallel>], iteration_bounds = array<i64: 1>, scalar_prefetch = 0 : i64, scratch_operands = 0 : i64, tpu.core_type = #tpu.core_type<tc>, window_params = [{transform_indices = @transform_0, window_bounds = array<i64: 32, 256>}, {pipeline_mode = #tpu.pipeline_mode<synchronous>, transform_indices = @transform_1, window_bounds = array<i64: 256, 512>}, {pipeline_mode = #tpu.pipeline_mode<synchronous>, transform_indices = @transform_2, window_bounds = array<i64: 1, 512>}, {pipeline_mode = #tpu.pipeline_mode<synchronous>, transform_indices = @transform_3, window_bounds = array<i64: 1, 512>}, {transform_indices = @transform_4, window_bounds = array<i64: 32, 512>}]} {
    %c0 = arith.constant 0 : index
    %c0_0 = arith.constant 0 : index
    %0 = vector.load %arg1[%c0, %c0_0] : memref<32x256xbf16, #tpu.memory_space<vmem>>, vector<32x256xbf16>
    %c0_1 = arith.constant 0 : index
    %c0_2 = arith.constant 0 : index
    %1 = vector.load %arg2[%c0_1, %c0_2] : memref<256x512xbf16, #tpu.memory_space<vmem>>, vector<256x512xbf16>
    %cst = arith.constant dense<0.000000e+00> : vector<32x512xf32>
    %2 = tpu.matmul %0, %1, %cst {dimension_numbers = #tpu.dot_dimension_numbers<[1], [0], [0], [1], [0, 0, 1, 1], [], []>} : vector<32x256xbf16>, vector<256x512xbf16>, vector<32x512xf32> -> vector<32x512xf32>
    %c0_3 = arith.constant 0 : index
    %c0_4 = arith.constant 0 : index
    %3 = vector.load %arg3[%c0_3, %c0_4] : memref<1x512xf32, #tpu.memory_space<vmem>>, vector<1x512xf32>
    %4 = vector.broadcast %3 : vector<1x512xf32> to vector<32x512xf32>
    %5 = arith.mulf %2, %4 : vector<32x512xf32>
    %c0_5 = arith.constant 0 : index
    %c0_6 = arith.constant 0 : index
    %6 = vector.load %arg4[%c0_5, %c0_6] : memref<1x512xf32, #tpu.memory_space<vmem>>, vector<1x512xf32>
    %7 = vector.broadcast %6 : vector<1x512xf32> to vector<32x512xf32>
    %8 = arith.addf %5, %7 : vector<32x512xf32>
    %cst_7 = arith.constant 3.000000e+00 : f32
    %9 = vector.broadcast %cst_7 : f32 to vector<32x512xf32>
    %10 = arith.addf %8, %9 : vector<32x512xf32>
    %cst_8 = arith.constant 0.000000e+00 : f32
    %cst_9 = arith.constant 6.000000e+00 : f32
    %11 = vector.broadcast %cst_8 : f32 to vector<32x512xf32>
    %12 = arith.maximumf %11, %10 : vector<32x512xf32>
    %13 = vector.broadcast %cst_9 : f32 to vector<32x512xf32>
    %14 = arith.minimumf %13, %12 : vector<32x512xf32>
    %cst_10 = arith.constant 0.166666672 : f32
    %15 = vector.broadcast %cst_10 : f32 to vector<32x512xf32>
    %16 = arith.mulf %14, %15 : vector<32x512xf32>
    %17 = arith.mulf %8, %16 : vector<32x512xf32>
    %c0_11 = arith.constant 0 : index
    %c0_12 = arith.constant 0 : index
    %18 = vector.load %arg5[%c0_11, %c0_12] : memref<32x512xf32, #tpu.memory_space<vmem>>, vector<32x512xf32>
    tpu.vector_store %arg5[%c0_11, %c0_12], %17 {strides = array<i32>} : memref<32x512xf32, #tpu.memory_space<vmem>>, vector<32x512xf32>,
    return
  }
  func.func @transform_0(%arg0: i32) -> (i32, i32) {
    %c0_i32 = arith.constant 0 : i32
    %c0_i32_0 = arith.constant 0 : i32
    return %arg0, %c0_i32 : i32, i32
  }
  func.func @transform_1(%arg0: i32) -> (i32, i32) {
    %c0_i32 = arith.constant 0 : i32
    %c0_i32_0 = arith.constant 0 : i32
    %c0_i32_1 = arith.constant 0 : i32
    return %c0_i32, %c0_i32_0 : i32, i32
  }
  func.func @transform_2(%arg0: i32) -> (i32, i32) {
    %c0_i32 = arith.constant 0 : i32
    %c0_i32_0 = arith.constant 0 : i32
    %c0_i32_1 = arith.constant 0 : i32
    return %c0_i32, %c0_i32_0 : i32, i32
  }
  func.func @transform_3(%arg0: i32) -> (i32, i32) {
    %c0_i32 = arith.constant 0 : i32
    %c0_i32_0 = arith.constant 0 : i32
    %c0_i32_1 = arith.constant 0 : i32
    return %c0_i32, %c0_i32_0 : i32, i32
  }
  func.func @transform_4(%arg0: i32) -> (i32, i32) {
    %c0_i32 = arith.constant 0 : i32
    %c0_i32_0 = arith.constant 0 : i32
    return %arg0, %c0_i32 : i32, i32
  }
}

</mosaic_0001>

<llo_original>
// kernel: conv_bn_hswish_forward.1
$region0: #{conv_bn_hswish_forward.1}
  #allocation0 [shape = 'u32[]', space=smem, size = 0x4, offset = 0x4, fixed_abs, tag = 'smem constant byte address 0x4 - core index']
  #allocation1 [shape = 'u32[72,128]{1,0:T(1,128)}', space=vmem, size = 0x9000, scoped, tag = 'internal scratch']
  %s0 = inlined_call_operand.vmem [shape: bf16[32,256], index: 0, kind: input, shape index: {}]
  %s1 = inlined_call_operand.vmem [shape: bf16[256,512], index: 1, kind: input, shape index: {}]
  %s2 = inlined_call_operand.vmem [shape: f32[1,512], index: 2, kind: input, shape index: {}]
  %s3 = inlined_call_operand.vmem [shape: f32[1,512], index: 3, kind: input, shape index: {}]
  %s4 = inlined_call_operand.vmem [shape: f32[32,512], index: 4, kind: output, shape index: {}]
  %s5 = sld [smem:[#allocation0]]
  $region26: #{conv_bn_hswish_forward.1} parent=0
    _
  %s7 = ssub.s32 1, %s5
  %s8 = scalar_select 0, %s7, %s5
  // Predicated region
  $region2: #{conv_bn_hswish_forward.1} parent=0 // pred_check
    _
  $region3: #{conv_bn_hswish_forward.1} parent=0 // pred_check_branch
    %10 = sbr.rel (0) target = $region5
  $region4: #{conv_bn_hswish_forward.1} parent=0 // pred_region
    _
  $region5: #{conv_bn_hswish_forward.1} parent=0 // pred_fallthru
    _
  // Predicated region
  $region6: #{conv_bn_hswish_forward.1} parent=0 // pred_check
    _
  $region7: #{conv_bn_hswish_forward.1} parent=0 // pred_check_branch
    %12 = sbr.rel (0) target = $region9
  $region8: #{conv_bn_hswish_forward.1} parent=0 // pred_region
    _
  $region9: #{conv_bn_hswish_forward.1} parent=0 // pred_fallthru
    _
  // Predicated region
  $region10: #{conv_bn_hswish_forward.1} parent=0 // pred_check
    _
  $region11: #{conv_bn_hswish_forward.1} parent=0 // pred_check_branch
    %14 = sbr.rel (0) target = $region13
  $region12: #{conv_bn_hswish_forward.1} parent=0 // pred_region
    _
  $region13: #{conv_bn_hswish_forward.1} parent=0 // pred_fallthru
    _
  // Predicated region
  $region14: #{conv_bn_hswish_forward.1} parent=0 // pred_check
    _
  $region15: #{conv_bn_hswish_forward.1} parent=0 // pred_check_branch
    %16 = sbr.rel (0) target = $region17
  $region16: #{conv_bn_hswish_forward.1} parent=0 // pred_region
    _
  $region17: #{conv_bn_hswish_forward.1} parent=0 // pred_fallthru
    _
  %v17 = vld [vmem:[%s0] sm:$0xff]
  %v18 = vld [vmem:[%s0 + $0x8] sm:$0xff]
  %v19 = vld [vmem:[%s0 + $0x10] sm:$0xff]
  %v20 = vld [vmem:[%s0 + $0x18] sm:$0xff]
  %v21 = vld [vmem:[%s1] sm:$0xff]
  %v22 = vld [vmem:[%s1 + $0x8] sm:$0xff]
  %v23 = vld [vmem:[%s1 + $0x10] sm:$0xff]
  %v24 = vld [vmem:[%s1 + $0x18] sm:$0xff]
  %v25 = vld [vmem:[%s1 + $0x20] sm:$0xff]
  %v26 = vld [vmem:[%s1 + $0x28] sm:$0xff]
  %v27 = vld [vmem:[%s1 + $0x30] sm:$0xff]
  %v28 = vld [vmem:[%s1 + $0x38] sm:$0xff]
  %v29 = vld [vmem:[%s1 + $0x40] sm:$0xff]
  %v30 = vld [vmem:[%s1 + $0x48] sm:$0xff]
  %v31 = vld [vmem:[%s1 + $0x50] sm:$0xff]
  %v32 = vld [vmem:[%s1 + $0x58] sm:$0xff]
  %v33 = vld [vmem:[%s1 + $0x60] sm:$0xff]
  %v34 = vld [vmem:[%s1 + $0x68] sm:$0xff]
  %v35 = vld [vmem:[%s1 + $0x70] sm:$0xff]
  %v36 = vld [vmem:[%s1 + $0x78] sm:$0xff]
  %v37 = vld [vmem:[%s1 + $0x80] sm:$0xff]
  %v38 = vld [vmem:[%s1 + $0x88] sm:$0xff]
  %v39 = vld [vmem:[%s1 + $0x90] sm:$0xff]
  %v40 = vld [vmem:[%s1 + $0x98] sm:$0xff]
  %v41 = vld [vmem:[%s1 + $0xa0] sm:$0xff]
  %v42 = vld [vmem:[%s1 + $0xa8] sm:$0xff]
  %v43 = vld [vmem:[%s1 + $0xb0] sm:$0xff]
  %v44 = vld [vmem:[%s1 + $0xb8] sm:$0xff]
  %v45 = vld [vmem:[%s1 + $0xc0] sm:$0xff]
  %v46 = vld [vmem:[%s1 + $0xc8] sm:$0xff]
  %v47 = vld [vmem:[%s1 + $0xd0] sm:$0xff]
  %v48 = vld [vmem:[%s1 + $0xd8] sm:$0xff]
  %v49 = vld [vmem:[%s1 + $0xe0] sm:$0xff]
  %v50 = vld [vmem:[%s1 + $0xe8] sm:$0xff]
  %v51 = vld [vmem:[%s1 + $0xf0] sm:$0xff]
  %v52 = vld [vmem:[%s1 + $0xf8] sm:$0xff]
  %v53 = vld [vmem:[%s1 + $0x100] sm:$0xff]
  %v54 = vld [vmem:[%s1 + $0x108] sm:$0xff]
  %v55 = vld [vmem:[%s1 + $0x110] sm:$0xff]
  %v56 = vld [vmem:[%s1 + $0x118] sm:$0xff]
  %v57 = vld [vmem:[%s1 + $0x120] sm:$0xff]
  %v58 = vld [vmem:[%s1 + $0x128] sm:$0xff]
  %v59 = vld [vmem:[%s1 + $0x130] sm:$0xff]
  %v60 = vld [vmem:[%s1 + $0x138] sm:$0xff]
  %v61 = vld [vmem:[%s1 + $0x140] sm:$0xff]
  %v62 = vld [vmem:[%s1 + $0x148] sm:$0xff]
  %v63 = vld [vmem:[%s1 + $0x150] sm:$0xff]
  %v64 = vld [vmem:[%s1 + $0x158] sm:$0xff]
  %v65 = vld [vmem:[%s1 + $0x160] sm:$0xff]
  %v66 = vld [vmem:[%s1 + $0x168] sm:$0xff]
  %v67 = vld [vmem:[%s1 + $0x170] sm:$0xff]
  %v68 = vld [vmem:[%s1 + $0x178] sm:$0xff]
  %v69 = vld [vmem:[%s1 + $0x180] sm:$0xff]
  %v70 = vld [vmem:[%s1 + $0x188] sm:$0xff]
  %v71 = vld [vmem:[%s1 + $0x190] sm:$0xff]
  %v72 = vld [vmem:[%s1 + $0x198] sm:$0xff]
  %v73 = vld [vmem:[%s1 + $0x1a0] sm:$0xff]
  %v74 = vld [vmem:[%s1 + $0x1a8] sm:$0xff]
  %v75 = vld [vmem:[%s1 + $0x1b0] sm:$0xff]
  %v76 = vld [vmem:[%s1 + $0x1b8] sm:$0xff]
  %v77 = vld [vmem:[%s1 + $0x1c0] sm:$0xff]
  %v78 = vld [vmem:[%s1 + $0x1c8] sm:$0xff]
  %v79 = vld [vmem:[%s1 + $0x1d0] sm:$0xff]
  %v80 = vld [vmem:[%s1 + $0x1d8] sm:$0xff]
  %v81 = vld [vmem:[%s1 + $0x1e0] sm:$0xff]
  %v82 = vld [vmem:[%s1 + $0x1e8] sm:$0xff]
  %v83 = vld [vmem:[%s1 + $0x1f0] sm:$0xff]
  %v84 = vld [vmem:[%s1 + $0x1f8] sm:$0xff]
  %v89 = vunpack.c.l.b16 %v17
  %v90 = vunpack.c.h.b16 %v17
  %v91 = vunpack.c.l.b16 %v18
  %v92 = vunpack.c.h.b16 %v18
  %v93 = vunpack.c.l.b16 %v19
  %v94 = vunpack.c.h.b16 %v19
  %v95 = vunpack.c.l.b16 %v20
  %v96 = vunpack.c.h.b16 %v20
  %v97 = vpack.c.b16 %v91, %v89
  %v98 = vpack.c.b16 %v92, %v90
  %v99 = vpack.c.b16 %v95, %v93
  %v100 = vpack.c.b16 %v96, %v94
  %v169 = vunpack.c.l.b16 %v21
  %v170 = vunpack.c.h.b16 %v21
  %v171 = vunpack.c.l.b16 %v22
  %v172 = vunpack.c.h.b16 %v22
  %v173 = vunpack.c.l.b16 %v23
  %v174 = vunpack.c.h.b16 %v23
  %v175 = vunpack.c.l.b16 %v24
  %v176 = vunpack.c.h.b16 %v24
  %v177 = vunpack.c.l.b16 %v25
  %v178 = vunpack.c.h.b16 %v25
  %v179 = vunpack.c.l.b16 %v26
  %v180 = vunpack.c.h.b16 %v26
  %v181 = vunpack.c.l.b16 %v27
  %v182 = vunpack.c.h.b16 %v27
  %v183 = vunpack.c.l.b16 %v28
  %v184 = vunpack.c.h.b16 %v28
  %v185 = vunpack.c.l.b16 %v29
  %v186 = vunpack.c.h.b16 %v29
  %v187 = vunpack.c.l.b16 %v30
  %v188 = vunpack.c.h.b16 %v30
  %v189 = vunpack.c.l.b16 %v31
  %v190 = vunpack.c.h.b16 %v31
  %v191 = vunpack.c.l.b16 %v32
  %v192 = vunpack.c.h.b16 %v32
  %v193 = vunpack.c.l.b16 %v33
  %v194 = vunpack.c.h.b16 %v33
  %v195 = vunpack.c.l.b16 %v34
  %v196 = vunpack.c.h.b16 %v34
  %v197 = vunpack.c.l.b16 %v35
  %v198 = vunpack.c.h.b16 %v35
  %v199 = vunpack.c.l.b16 %v36
  %v200 = vunpack.c.h.b16 %v36
  %v201 = vunpack.c.l.b16 %v37
  %v202 = vunpack.c.h.b16 %v37
  %v203 = vunpack.c.l.b16 %v38
  %v204 = vunpack.c.h.b16 %v38
  %v205 = vunpack.c.l.b16 %v39
  %v206 = vunpack.c.h.b16 %v39
  %v207 = vunpack.c.l.b16 %v40
  %v208 = vunpack.c.h.b16 %v40
  %v209 = vunpack.c.l.b16 %v41
  %v210 = vunpack.c.h.b16 %v41
  %v211 = vunpack.c.l.b16 %v42
  %v212 = vunpack.c.h.b16 %v42
  %v213 = vunpack.c.l.b16 %v43
  %v214 = vunpack.c.h.b16 %v43
  %v215 = vunpack.c.l.b16 %v44
  %v216 = vunpack.c.h.b16 %v44
  %v217 = vunpack.c.l.b16 %v45
  %v218 = vunpack.c.h.b16 %v45
  %v219 = vunpack.c.l.b16 %v46
  %v220 = vunpack.c.h.b16 %v46
  %v221 = vunpack.c.l.b16 %v47
  %v222 = vunpack.c.h.b16 %v47
  %v223 = vunpack.c.l.b16 %v48
  %v224 = vunpack.c.h.b16 %v48
  %v225 = vunpack.c.l.b16 %v49
  %v226 = vunpack.c.h.b16 %v49
  %v227 = vunpack.c.l.b16 %v50
  %v228 = vunpack.c.h.b16 %v50
  %v229 = vunpack.c.l.b16 %v51
  %v230 = vunpack.c.h.b16 %v51
  %v231 = vunpack.c.l.b16 %v52
  %v232 = vunpack.c.h.b16 %v52
  %v233 = vunpack.c.l.b16 %v53
  %v234 = vunpack.c.h.b16 %v53
  %v235 = vunpack.c.l.b16 %v54
  %v236 = vunpack.c.h.b16 %v54
  %v237 = vunpack.c.l.b16 %v55
  %v238 = vunpack.c.h.b16 %v55
  %v239 = vunpack.c.l.b16 %v56
  %v240 = vunpack.c.h.b16 %v56
  %v241 = vunpack.c.l.b16 %v57
  %v242 = vunpack.c.h.b16 %v57
  %v243 = vunpack.c.l.b16 %v58
  %v244 = vunpack.c.h.b16 %v58
  %v245 = vunpack.c.l.b16 %v59
  %v246 = vunpack.c.h.b16 %v59
  %v247 = vunpack.c.l.b16 %v60
  %v248 = vunpack.c.h.b16 %v60
  %v249 = vunpack.c.l.b16 %v61
  %v250 = vunpack.c.h.b16 %v61
  %v251 = vunpack.c.l.b16 %v62
  %v252 = vunpack.c.h.b16 %v62
  %v253 = vunpack.c.l.b16 %v63
  %v254 = vunpack.c.h.b16 %v63
  %v255 = vunpack.c.l.b16 %v64
  %v256 = vunpack.c.h.b16 %v64
  %v257 = vunpack.c.l.b16 %v65
  %v258 = vunpack.c.h.b16 %v65
  %v259 = vunpack.c.l.b16 %v66
  %v260 = vunpack.c.h.b16 %v66
  %v261 = vunpack.c.l.b16 %v67
  %v262 = vunpack.c.h.b16 %v67
  %v263 = vunpack.c.l.b16 %v68
  %v264 = vunpack.c.h.b16 %v68
  %v265 = vunpack.c.l.b16 %v69
  %v266 = vunpack.c.h.b16 %v69
  %v267 = vunpack.c.l.b16 %v70
  %v268 = vunpack.c.h.b16 %v70
  %v269 = vunpack.c.l.b16 %v71
  %v270 = vunpack.c.h.b16 %v71
  %v271 = vunpack.c.l.b16 %v72
  %v272 = vunpack.c.h.b16 %v72
  %v273 = vunpack.c.l.b16 %v73
  %v274 = vunpack.c.h.b16 %v73
  %v275 = vunpack.c.l.b16 %v74
  %v276 = vunpack.c.h.b16 %v74
  %v277 = vunpack.c.l.b16 %v75
  %v278 = vunpack.c.h.b16 %v75
  %v279 = vunpack.c.l.b16 %v76
  %v280 = vunpack.c.h.b16 %v76
  %v281 = vunpack.c.l.b16 %v77
  %v282 = vunpack.c.h.b16 %v77
  %v283 = vunpack.c.l.b16 %v78
  %v284 = vunpack.c.h.b16 %v78
  %v285 = vunpack.c.l.b16 %v79
  %v286 = vunpack.c.h.b16 %v79
  %v287 = vunpack.c.l.b16 %v80
  %v288 = vunpack.c.h.b16 %v80
  %v289 = vunpack.c.l.b16 %v81
  %v290 = vunpack.c.h.b16 %v81
  %v291 = vunpack.c.l.b16 %v82
  %v292 = vunpack.c.h.b16 %v82
  %v293 = vunpack.c.l.b16 %v83
  %v294 = vunpack.c.h.b16 %v83
  %v295 = vunpack.c.l.b16 %v84
  %v296 = vunpack.c.h.b16 %v84
  %v297 = vpack.c.b16 %v173, %v169
  %v298 = vpack.c.b16 %v174, %v170
  %v299 = vpack.c.b16 %v175, %v171
  %v300 = vpack.c.b16 %v176, %v172
  %v301 = vpack.c.b16 %v181, %v177
  %v302 = vpack.c.b16 %v182, %v178
  %v303 = vpack.c.b16 %v183, %v179
  %v304 = vpack.c.b16 %v184, %v180
  %v305 = vpack.c.b16 %v189, %v185
  %v306 = vpack.c.b16 %v190, %v186
  %v307 = vpack.c.b16 %v191, %v187
  %v308 = vpack.c.b16 %v192, %v188
  %v309 = vpack.c.b16 %v197, %v193
  %v310 = vpack.c.b16 %v198, %v194
  %v311 = vpack.c.b16 %v199, %v195
  %v312 = vpack.c.b16 %v200, %v196
  %v313 = vpack.c.b16 %v205, %v201
  %v314 = vpack.c.b16 %v206, %v202
  %v315 = vpack.c.b16 %v207, %v203
  %v316 = vpack.c.b16 %v208, %v204
  %v317 = vpack.c.b16 %v213, %v209
  %v318 = vpack.c.b16 %v214, %v210
  %v319 = vpack.c.b16 %v215, %v211
  %v320 = vpack.c.b16 %v216, %v212
  %v321 = vpack.c.b16 %v221, %v217
  %v322 = vpack.c.b16 %v222, %v218
  %v323 = vpack.c.b16 %v223, %v219
  %v324 = vpack.c.b16 %v224, %v220
  %v325 = vpack.c.b16 %v229, %v225
  %v326 = vpack.c.b16 %v230, %v226
  %v327 = vpack.c.b16 %v231, %v227
  %v328 = vpack.c.b16 %v232, %v228
  %v329 = vpack.c.b16 %v237, %v233
  %v330 = vpack.c.b16 %v238, %v234
  %v331 = vpack.c.b16 %v239, %v235
  %v332 = vpack.c.b16 %v240, %v236
  %v333 = vpack.c.b16 %v245, %v241
  %v334 = vpack.c.b16 %v246, %v242
  %v335 = vpack.c.b16 %v247, %v243
  %v336 = vpack.c.b16 %v248, %v244
  %v337 = vpack.c.b16 %v253, %v249
  %v338 = vpack.c.b16 %v254, %v250
  %v339 = vpack.c.b16 %v255, %v251
  %v340 = vpack.c.b16 %v256, %v252
  %v341 = vpack.c.b16 %v261, %v257
  %v342 = vpack.c.b16 %v262, %v258
  %v343 = vpack.c.b16 %v263, %v259
  %v344 = vpack.c.b16 %v264, %v260
  %v345 = vpack.c.b16 %v269, %v265
  %v346 = vpack.c.b16 %v270, %v266
  %v347 = vpack.c.b16 %v271, %v267
  %v348 = vpack.c.b16 %v272, %v268
  %v349 = vpack.c.b16 %v277, %v273
  %v350 = vpack.c.b16 %v278, %v274
  %v351 = vpack.c.b16 %v279, %v275
  %v352 = vpack.c.b16 %v280, %v276
  %v353 = vpack.c.b16 %v285, %v281
  %v354 = vpack.c.b16 %v286, %v282
  %v355 = vpack.c.b16 %v287, %v283
  %v356 = vpack.c.b16 %v288, %v284
  %v357 = vpack.c.b16 %v293, %v289
  %v358 = vpack.c.b16 %v294, %v290
  %v359 = vpack.c.b16 %v295, %v291
  %v360 = vpack.c.b16 %v296, %v292
  %425 = vmatpush.bf16.msra.mxu0 %v325
  %426 = vmatpush.bf16.msra.mxu0 %v321
  %427 = vmatpush.bf16.msra.mxu0 %v317
  %428 = vmatpush.bf16.msra.mxu0 %v313
  %429 = vmatpush.bf16.msra.mxu0 %v309
  %430 = vmatpush.bf16.msra.mxu0 %v305
  %431 = vmatpush.bf16.msra.mxu0 %v301
  %432 = vmatpush.bf16.msra.mxu0 %v297
  %433 = vmatmul.bf16.gmra.mxu0 %v97
  %v434 = vpop.f32.mrf.mxu0
  %v435 = vadd.f32 0.0, %v434
  %v436 = vpop.f32.mrf.mxu0
  %v437 = vadd.f32 0.0, %v436
  %438 = vmatmul.bf16.gmra.mxu0 %v99
  %v439 = vpop.f32.mrf.mxu0
  %v440 = vadd.f32 0.0, %v439
  %v441 = vpop.f32.mrf.mxu0
  %v442 = vadd.f32 0.0, %v441
  %443 = vdwg.mxu0
  %444 = vmatpush.bf16.msra.mxu0 %v357
  %445 = vmatpush.bf16.msra.mxu0 %v353
  %446 = vmatpush.bf16.msra.mxu0 %v349
  %447 = vmatpush.bf16.msra.mxu0 %v345
  %448 = vmatpush.bf16.msra.mxu0 %v341
  %449 = vmatpush.bf16.msra.mxu0 %v337
  %450 = vmatpush.bf16.msra.mxu0 %v333
  %451 = vmatpush.bf16.msra.mxu0 %v329
  %452 = vmatmul.bf16.gmra.mxu0 %v98
  %v453 = vpop.f32.mrf.mxu0
  %v454 = vadd.f32 %v435, %v453
  %v455 = vpop.f32.mrf.mxu0
  %v456 = vadd.f32 %v437, %v455
  %457 = vmatmul.bf16.gmra.mxu0 %v100
  %v458 = vpop.f32.mrf.mxu0
  %v459 = vadd.f32 %v440, %v458
  %v460 = vpop.f32.mrf.mxu0
  %v461 = vadd.f32 %v442, %v460
  %462 = vdwg.mxu0
  %463 = vmatpush.bf16.msra.mxu0 %v326
  %464 = vmatpush.bf16.msra.mxu0 %v322
  %465 = vmatpush.bf16.msra.mxu0 %v318
  %466 = vmatpush.bf16.msra.mxu0 %v314
  %467 = vmatpush.bf16.msra.mxu0 %v310
  %468 = vmatpush.bf16.msra.mxu0 %v306
  %469 = vmatpush.bf16.msra.mxu0 %v302
  %470 = vmatpush.bf16.msra.mxu0 %v298
  %471 = vmatmul.bf16.gmra.mxu0 %v97
  %v472 = vpop.f32.mrf.mxu0
  %v473 = vadd.f32 0.0, %v472
  %v474 = vpop.f32.mrf.mxu0
  %v475 = vadd.f32 0.0, %v474
  %476 = vmatmul.bf16.gmra.mxu0 %v99
  %v477 = vpop.f32.mrf.mxu0
  %v478 = vadd.f32 0.0, %v477
  %v479 = vpop.f32.mrf.mxu0
  %v480 = vadd.f32 0.0, %v479
  %481 = vdwg.mxu0
  %482 = vmatpush.bf16.msra.mxu0 %v358
  %483 = vmatpush.bf16.msra.mxu0 %v354
  %484 = vmatpush.bf16.msra.mxu0 %v350
  %485 = vmatpush.bf16.msra.mxu0 %v346
  %486 = vmatpush.bf16.msra.mxu0 %v342
  %487 = vmatpush.bf16.msra.mxu0 %v338
  %488 = vmatpush.bf16.msra.mxu0 %v334
  %489 = vmatpush.bf16.msra.mxu0 %v330
  %490 = vmatmul.bf16.gmra.mxu0 %v98
  %v491 = vpop.f32.mrf.mxu0
  %v492 = vadd.f32 %v473, %v491
  %v493 = vpop.f32.mrf.mxu0
  %v494 = vadd.f32 %v475, %v493
  %495 = vmatmul.bf16.gmra.mxu0 %v100
  %v496 = vpop.f32.mrf.mxu0
  %v497 = vadd.f32 %v478, %v496
  %v498 = vpop.f32.mrf.mxu0
  %v499 = vadd.f32 %v480, %v498
  %500 = vdwg.mxu0
  %501 = vmatpush.bf16.msra.mxu0 %v327
  %502 = vmatpush.bf16.msra.mxu0 %v323
  %503 = vmatpush.bf16.msra.mxu0 %v319
  %504 = vmatpush.bf16.msra.mxu0 %v315
  %505 = vmatpush.bf16.msra.mxu0 %v311
  %506 = vmatpush.bf16.msra.mxu0 %v307
  %507 = vmatpush.bf16.msra.mxu0 %v303
  %508 = vmatpush.bf16.msra.mxu0 %v299
  %509 = vmatmul.bf16.gmra.mxu0 %v97
  %v510 = vpop.f32.mrf.mxu0
  %v511 = vadd.f32 0.0, %v510
  %v512 = vpop.f32.mrf.mxu0
  %v513 = vadd.f32 0.0, %v512
  %514 = vmatmul.bf16.gmra.mxu0 %v99
  %v515 = vpop.f32.mrf.mxu0
  %v516 = vadd.f32 0.0, %v515
  %v517 = vpop.f32.mrf.mxu0
  %v518 = vadd.f32 0.0, %v517
  %519 = vdwg.mxu0
  %520 = vmatpush.bf16.msra.mxu0 %v359
  %521 = vmatpush.bf16.msra.mxu0 %v355
  %522 = vmatpush.bf16.msra.mxu0 %v351
  %523 = vmatpush.bf16.msra.mxu0 %v347
  %524 = vmatpush.bf16.msra.mxu0 %v343
  %525 = vmatpush.bf16.msra.mxu0 %v339
  %526 = vmatpush.bf16.msra.mxu0 %v335
  %527 = vmatpush.bf16.msra.mxu0 %v331
  %528 = vmatmul.bf16.gmra.mxu0 %v98
  %v529 = vpop.f32.mrf.mxu0
  %v530 = vadd.f32 %v511, %v529
  %v531 = vpop.f32.mrf.mxu0
  %v532 = vadd.f32 %v513, %v531
  %533 = vmatmul.bf16.gmra.mxu0 %v100
  %v534 = vpop.f32.mrf.mxu0
  %v535 = vadd.f32 %v516, %v534
  %v536 = vpop.f32.mrf.mxu0
  %v537 = vadd.f32 %v518, %v536
  %538 = vdwg.mxu0
  %539 = vmatpush.bf16.msra.mxu0 %v328
  %540 = vmatpush.bf16.msra.mxu0 %v324
  %541 = vmatpush.bf16.msra.mxu0 %v320
  %542 = vmatpush.bf16.msra.mxu0 %v316
  %543 = vmatpush.bf16.msra.mxu0 %v312
  %544 = vmatpush.bf16.msra.mxu0 %v308
  %545 = vmatpush.bf16.msra.mxu0 %v304
  %546 = vmatpush.bf16.msra.mxu0 %v300
  %547 = vmatmul.bf16.gmra.mxu0 %v97
  %v548 = vpop.f32.mrf.mxu0
  %v549 = vadd.f32 0.0, %v548
  %v550 = vpop.f32.mrf.mxu0
  %v551 = vadd.f32 0.0, %v550
  %552 = vmatmul.bf16.gmra.mxu0 %v99
  %v553 = vpop.f32.mrf.mxu0
  %v554 = vadd.f32 0.0, %v553
  %v555 = vpop.f32.mrf.mxu0
  %v556 = vadd.f32 0.0, %v555
  %557 = vdwg.mxu0
  %558 = vmatpush.bf16.msra.mxu0 %v360
  %559 = vmatpush.bf16.msra.mxu0 %v356
  %560 = vmatpush.bf16.msra.mxu0 %v352
  %561 = vmatpush.bf16.msra.mxu0 %v348
  %562 = vmatpush.bf16.msra.mxu0 %v344
  %563 = vmatpush.bf16.msra.mxu0 %v340
  %564 = vmatpush.bf16.msra.mxu0 %v336
  %565 = vmatpush.bf16.msra.mxu0 %v332
  %566 = vmatmul.bf16.gmra.mxu0 %v98
  %v567 = vpop.f32.mrf.mxu0
  %v568 = vadd.f32 %v549, %v567
  %v569 = vpop.f32.mrf.mxu0
  %v570 = vadd.f32 %v551, %v569
  %571 = vmatmul.bf16.gmra.mxu0 %v100
  %v572 = vpop.f32.mrf.mxu0
  %v573 = vadd.f32 %v554, %v572
  %v574 = vpop.f32.mrf.mxu0
  %v575 = vadd.f32 %v556, %v574
  %576 = vdwg.mxu0
  %v577 = vld [vmem:[%s2] sm:$0xf]
  %v579 = vperm.slane %v577, 0
  %v580 = vperm.slane %v577, 1
  %v581 = vperm.slane %v577, 2
  %v582 = vperm.slane %v577, 3
  %v587 = vmul.f32 %v454, %v579
  %v588 = vmul.f32 %v492, %v580
  %v589 = vmul.f32 %v530, %v581
  %v590 = vmul.f32 %v568, %v582
  %v591 = vmul.f32 %v456, %v579
  %v592 = vmul.f32 %v494, %v580
  %v593 = vmul.f32 %v532, %v581
  %v594 = vmul.f32 %v570, %v582
  %v595 = vmul.f32 %v459, %v579
  %v596 = vmul.f32 %v497, %v580
  %v597 = vmul.f32 %v535, %v581
  %v598 = vmul.f32 %v573, %v582
  %v599 = vmul.f32 %v461, %v579
  %v600 = vmul.f32 %v499, %v580
  %v601 = vmul.f32 %v537, %v581
  %v602 = vmul.f32 %v575, %v582
  %v603 = vld [vmem:[%s3] sm:$0xf]
  %v605 = vperm.slane %v603, 0
  %v606 = vperm.slane %v603, 1
  %v607 = vperm.slane %v603, 2
  %v608 = vperm.slane %v603, 3
  %v613 = vadd.f32 %v587, %v605
  %v614 = vadd.f32 %v588, %v606
  %v615 = vadd.f32 %v589, %v607
  %v616 = vadd.f32 %v590, %v608
  %v617 = vadd.f32 %v591, %v605
  %v618 = vadd.f32 %v592, %v606
  %v619 = vadd.f32 %v593, %v607
  %v620 = vadd.f32 %v594, %v608
  %v621 = vadd.f32 %v595, %v605
  %v622 = vadd.f32 %v596, %v606
  %v623 = vadd.f32 %v597, %v607
  %v624 = vadd.f32 %v598, %v608
  %v625 = vadd.f32 %v599, %v605
  %v626 = vadd.f32 %v600, %v606
  %v627 = vadd.f32 %v601, %v607
  %v628 = vadd.f32 %v602, %v608
  %v629 = vadd.f32 %v613, 3.0
  %v630 = vadd.f32 %v614, 3.0
  %v631 = vadd.f32 %v615, 3.0
  %v632 = vadd.f32 %v616, 3.0
  %v633 = vadd.f32 %v617, 3.0
  %v634 = vadd.f32 %v618, 3.0
  %v635 = vadd.f32 %v619, 3.0
  %v636 = vadd.f32 %v620, 3.0
  %v637 = vadd.f32 %v621, 3.0
  %v638 = vadd.f32 %v622, 3.0
  %v639 = vadd.f32 %v623, 3.0
  %v640 = vadd.f32 %v624, 3.0
  %v641 = vadd.f32 %v625, 3.0
  %v642 = vadd.f32 %v626, 3.0
  %v643 = vadd.f32 %v627, 3.0
  %v644 = vadd.f32 %v628, 3.0
  %v645 = vmax.f32 %v629, 0.0
  %v646 = vmax.f32 %v630, 0.0
  %v647 = vmax.f32 %v631, 0.0
  %v648 = vmax.f32 %v632, 0.0
  %v649 = vmax.f32 %v633, 0.0
  %v650 = vmax.f32 %v634, 0.0
  %v651 = vmax.f32 %v635, 0.0
  %v652 = vmax.f32 %v636, 0.0
  %v653 = vmax.f32 %v637, 0.0
  %v654 = vmax.f32 %v638, 0.0
  %v655 = vmax.f32 %v639, 0.0
  %v656 = vmax.f32 %v640, 0.0
  %v657 = vmax.f32 %v641, 0.0
  %v658 = vmax.f32 %v642, 0.0
  %v659 = vmax.f32 %v643, 0.0
  %v660 = vmax.f32 %v644, 0.0
  %v661 = vmin.f32 %v645, 6.0
  %v662 = vmin.f32 %v646, 6.0
  %v663 = vmin.f32 %v647, 6.0
  %v664 = vmin.f32 %v648, 6.0
  %v665 = vmin.f32 %v649, 6.0
  %v666 = vmin.f32 %v650, 6.0
  %v667 = vmin.f32 %v651, 6.0
  %v668 = vmin.f32 %v652, 6.0
  %v669 = vmin.f32 %v653, 6.0
  %v670 = vmin.f32 %v654, 6.0
  %v671 = vmin.f32 %v655, 6.0
  %v672 = vmin.f32 %v656, 6.0
  %v673 = vmin.f32 %v657, 6.0
  %v674 = vmin.f32 %v658, 6.0
  %v675 = vmin.f32 %v659, 6.0
  %v676 = vmin.f32 %v660, 6.0
  %v677 = vmul.f32 %v661, 0.16666667
  %v678 = vmul.f32 %v662, 0.16666667
  %v679 = vmul.f32 %v663, 0.16666667
  %v680 = vmul.f32 %v664, 0.16666667
  %v681 = vmul.f32 %v665, 0.16666667
  %v682 = vmul.f32 %v666, 0.16666667
  %v683 = vmul.f32 %v667, 0.16666667
  %v684 = vmul.f32 %v668, 0.16666667
  %v685 = vmul.f32 %v669, 0.16666667
  %v686 = vmul.f32 %v670, 0.16666667
  %v687 = vmul.f32 %v671, 0.16666667
  %v688 = vmul.f32 %v672, 0.16666667
  %v689 = vmul.f32 %v673, 0.16666667
  %v690 = vmul.f32 %v674, 0.16666667
  %v691 = vmul.f32 %v675, 0.16666667
  %v692 = vmul.f32 %v676, 0.16666667
  %v693 = vmul.f32 %v613, %v677
  %v694 = vmul.f32 %v614, %v678
  %v695 = vmul.f32 %v615, %v679
  %v696 = vmul.f32 %v616, %v680
  %v697 = vmul.f32 %v617, %v681
  %v698 = vmul.f32 %v618, %v682
  %v699 = vmul.f32 %v619, %v683
  %v700 = vmul.f32 %v620, %v684
  %v701 = vmul.f32 %v621, %v685
  %v702 = vmul.f32 %v622, %v686
  %v703 = vmul.f32 %v623, %v687
  %v704 = vmul.f32 %v624, %v688
  %v705 = vmul.f32 %v625, %v689
  %v706 = vmul.f32 %v626, %v690
  %v707 = vmul.f32 %v627, %v691
  %v708 = vmul.f32 %v628, %v692
  %709 = vst [vmem:[%s4] sm:$0xff] %v693
  %710 = vst [vmem:[%s4 + $0x8] sm:$0xff] %v694
  %711 = vst [vmem:[%s4 + $0x10] sm:$0xff] %v695
  %712 = vst [vmem:[%s4 + $0x18] sm:$0xff] %v696
  %713 = vst [vmem:[%s4 + $0x20] sm:$0xff] %v697
  %714 = vst [vmem:[%s4 + $0x28] sm:$0xff] %v698
  %715 = vst [vmem:[%s4 + $0x30] sm:$0xff] %v699
  %716 = vst [vmem:[%s4 + $0x38] sm:$0xff] %v700
  %717 = vst [vmem:[%s4 + $0x40] sm:$0xff] %v701
  %718 = vst [vmem:[%s4 + $0x48] sm:$0xff] %v702
  %719 = vst [vmem:[%s4 + $0x50] sm:$0xff] %v703
  %720 = vst [vmem:[%s4 + $0x58] sm:$0xff] %v704
  %721 = vst [vmem:[%s4 + $0x60] sm:$0xff] %v705
  %722 = vst [vmem:[%s4 + $0x68] sm:$0xff] %v706
  %723 = vst [vmem:[%s4 + $0x70] sm:$0xff] %v707
  %724 = vst [vmem:[%s4 + $0x78] sm:$0xff] %v708
  // Predicated region
  $region18: #{conv_bn_hswish_forward.1} parent=0 // pred_check
    _
  $region19: #{conv_bn_hswish_forward.1} parent=0 // pred_check_branch
    %726 = sbr.rel (0) target = $region21
  $region20: #{conv_bn_hswish_forward.1} parent=0 // pred_region
    _
  $region21: #{conv_bn_hswish_forward.1} parent=0 // pred_fallthru
    _
  // Predicated region
  $region22: #{conv_bn_hswish_forward.1} parent=0 // pred_check
    _
  $region23: #{conv_bn_hswish_forward.1} parent=0 // pred_check_branch
    %728 = sbr.rel (0) target = $region25
  $region24: #{conv_bn_hswish_forward.1} parent=0 // pred_region
    _
  $region25: #{conv_bn_hswish_forward.1} parent=0 // pred_fallthru
    _

</llo_original>
